<compile_context>
chip_gen: v7x
topology: tpu7x:2x2x1
jax: 0.10.0
libtpu: 0.0.40
codegen_flags: <defaults>
</compile_context>

<pallas_src>
import functools

import jax
import jax.numpy as jnp
from jax import lax
from jax.experimental import pallas as pl
from jax.experimental.pallas import tpu as pltpu

EPS = 1e-5
CONV_VMEM_LIMIT = 48 * 1024 * 1024    # scoped-VMEM request; < v7x's 64 MiB physical
STATS_VMEM_LIMIT = 32 * 1024 * 1024


def _round_up(x, m):
    return ((x + m - 1) // m) * m


# --------------------------------------------------------------------------- #
# Batch statistics: grid-tiled sum / sum-of-squares reduction.                 #
# --------------------------------------------------------------------------- #
def _bn_stats_kernel(x_ref, sum_ref, ssq_ref):
    """x_ref: (BLOCK_ROWS, fold*Cin) lane-packed rows; resident accumulators."""

    @pl.when(pl.program_id(0) == 0)
    def _init():
        sum_ref[...] = jnp.zeros_like(sum_ref)
        ssq_ref[...] = jnp.zeros_like(ssq_ref)

    xb = x_ref[...]
    sum_ref[...] += jnp.sum(xb, axis=0, keepdims=True)
    ssq_ref[...] += jnp.sum(xb * xb, axis=0, keepdims=True)


def _pick_fold(m_total, c_in):
    """Largest divisor of m_total that keeps fold*Cin <= 128 (lane-dense packing)."""
    fold_max = max(1, 128 // c_in)
    best = 1
    for f in range(1, fold_max + 1):
        if m_total % f == 0:
            best = f
    return best


# --------------------------------------------------------------------------- #
# Fused BN + ReLU + banded 3x3 conv.                                           #
# --------------------------------------------------------------------------- #
def _bn_relu_conv_kernel(x_ref, scale_ref, shift_ref, w_ref, o_ref,
                         ypad_ref, acc_ref, *,
                         tb, h, w, c_pad, c_out, g_out, n_groups, win,
                         stride, m_rows):
    """One grid step: TB images folded into the matmul M axis.

    x_ref:     (TB*H, W*C_PAD)               raw f32 activations, lane-packed
    scale_ref: (1, W*C_PAD)                  gamma * rsqrt(var+eps), W-tiled, pad chans = 0
    shift_ref: (1, W*C_PAD)                  beta - mean*scale,      W-tiled, pad chans = 0
    w_ref:     (3, win*C_PAD, G_OUT*COUT)    banded bf16 conv weight (shared by W groups)
    o_ref:     (M_ROWS, W_OUT*COUT)          lane-dense conv output
    ypad_ref:  VMEM (M_ROWS+2, (W+2)*C_PAD)  f32 stacked, H/W zero-padded activations
    acc_ref:   VMEM (M_ROWS, G_OUT*COUT)     f32 MXU accumulator
    """
    lw = (w + 2) * c_pad
    s_rows = m_rows + 2

    # ---- BatchNorm + ReLU in f32 on the VPU ----
    y = jnp.maximum(x_ref[...] * scale_ref[...] + shift_ref[...], 0.0)   # (TB*H, W*C_PAD)

    # ---- stack TB images into one zero-separated, zero-padded slab in VMEM ----
    # Halo zeroing is redone every step (a few 1-row stores + 2 thin lane strips):
    # hoisting it under pl.when(program_id == 0) is unsafe when the grid axis is
    # "parallel" (each TensorCore has its own scratch and may never run step 0).
    for i in range(tb):
        ypad_ref[i * (h + 1):i * (h + 1) + 1, :] = jnp.zeros((1, lw), jnp.float32)
    ypad_ref[tb * (h + 1):s_rows, :] = jnp.zeros(
        (s_rows - tb * (h + 1), lw), jnp.float32)
    zcol = jnp.zeros((s_rows, c_pad), jnp.float32)
    ypad_ref[:, 0:c_pad] = zcol
    ypad_ref[:, (w + 1) * c_pad:(w + 2) * c_pad] = zcol
    for i in range(tb):
        ypad_ref[i * (h + 1) + 1:i * (h + 1) + 1 + h,
                 c_pad:(w + 1) * c_pad] = y[i * h:(i + 1) * h, :]

    # ---- 3 banded MXU dots per W_out group; bf16 operands, f32 VMEM accumulation ----
    kwidth = win * c_pad
    for g in range(n_groups):
        lane0 = stride * g * g_out * c_pad
        for dh in range(3):
            band = ypad_ref[dh:dh + m_rows,
                            lane0:lane0 + kwidth].astype(jnp.bfloat16)
            contrib = jnp.dot(band, w_ref[dh],
                              preferred_element_type=jnp.float32)
            if dh == 0:
                acc_ref[...] = contrib
            else:
                acc_ref[...] += contrib
        o_ref[:, g * g_out * c_out:(g + 1) * g_out * c_out] = (
            acc_ref[...].astype(o_ref.dtype))


def _band_weight(w_hwio, c_pad, g_out, c_out, stride):
    """(3,3,Cin,Cout) HWIO -> (3, win*C_PAD, G_OUT*Cout) banded bf16 weight.

    The activation scratch already carries the W zero-padding, so the band is
    translation invariant and shared by every W_out group:
      band[dh, wi*C_PAD+ci, wo*Cout+co] = w[dh, wi - stride*wo, ci, co]
    when 0 <= wi - stride*wo < 3, else 0.  Size is independent of W (unlike the
    dense block-Toeplitz form), so it scales past toy shapes.
    """
    _, _, c_in, _ = w_hwio.shape
    win = stride * (g_out - 1) + 3
    w_p = jnp.pad(w_hwio, ((0, 0), (0, 0), (0, c_pad - c_in), (0, 0)))
    dw = jnp.arange(win)[:, None] - stride * jnp.arange(g_out)[None, :]   # (win, G_OUT)
    valid = ((dw >= 0) & (dw < 3)).astype(w_p.dtype)
    t = w_p[:, jnp.clip(dw, 0, 2)]                    # (3, win, G_OUT, C_PAD, Cout)
    t = t * valid[None, :, :, None, None]
    t = jnp.transpose(t, (0, 1, 3, 2, 4))             # (3, win, C_PAD, G_OUT, Cout)
    return t.reshape(3, win * c_pad, g_out * c_out).astype(jnp.bfloat16)


def _pick_c_pad(c_in, w):
    """Pad Cin (only when <= 2x) so the packed lane width W*C_PAD is 128-dense."""
    for c in range(c_in, 2 * c_in + 1):
        if (w * c) % 128 == 0:
            return c
    return c_in


def _pick_g_out(w_out, c_out, cap=512):
    """Largest divisor of W_out with G_OUT*Cout lanes <= cap (banded-weight group)."""
    best = 1
    for g in range(1, w_out + 1):
        if w_out % g == 0 and g * c_out <= cap:
            best = g
    return best


def _conv_step_vmem_bytes(tb, h, w, c_pad, c_out, w_out, g_out, win):
    m_rows = _round_up(tb * (h + 1), 8)
    x_blk = 2 * (tb * h) * (w * c_pad) * 4          # double-buffered f32 input
    out_blk = 2 * m_rows * (w_out * c_out) * 4      # double-buffered f32 output
    wgt = 3 * (win * c_pad) * (g_out * c_out) * 2   # bf16 banded weight
    vec = 2 * 2 * (w * c_pad) * 4                   # scale / shift
    ypad = (m_rows + 2) * ((w + 2) * c_pad) * 4     # f32 stacked activation scratch
    acc = m_rows * (g_out * c_out) * 4              # f32 accumulator
    return x_blk + out_blk + wgt + vec + ypad + acc


def _pick_tb(n, h, w, c_pad, c_out, w_out, g_out, win, target_rows=256):
    """Images folded into the matmul M axis per grid step (VMEM-budgeted)."""
    best = 1
    for tb in range(1, n + 1):
        if n % tb:
            continue
        if (tb * h) % 8 and tb != n:        # block rows must stay sublane-aligned
            continue
        if tb * (h + 1) > target_rows and tb > 1:
            continue
        if _conv_step_vmem_bytes(tb, h, w, c_pad, c_out, w_out, g_out,
                                 win) > CONV_VMEM_LIMIT // 2:
            continue
        best = tb
    return best


def bn_relu_conv(x_nchw, gamma, beta, w_oihw, stride=1, out_dtype=jnp.float32):
    """Forward pass of BnReLUConv (training-mode BN).  PyTorch layouts in/out."""
    x = jnp.transpose(x_nchw, (0, 2, 3, 1)).astype(jnp.float32)          # NHWC
    n, h, w, c_in = x.shape
    c_out = w_oihw.shape[0]
    w_hwio = jnp.transpose(w_oihw, (2, 3, 1, 0)).astype(jnp.float32)     # HWIO

    # ---------------- batch statistics (tiled, lane-dense reduction) ---------------- #
    m_total = n * h * w
    fold = _pick_fold(m_total, c_in)
    lanes = fold * c_in
    rows = m_total // fold
    block_rows = min(1024, _round_up(rows, 8))
    n_blocks = pl.cdiv(rows, block_rows)
    rows_pad = n_blocks * block_rows
    x_fold = x.reshape(rows, lanes)
    if rows_pad != rows:
        # zero-padded tail rows contribute 0 to both sums -- no mask needed
        x_fold = jnp.pad(x_fold, ((0, rows_pad - rows), (0, 0)))

    sums, ssqs = pl.pallas_call(
        _bn_stats_kernel,
        out_shape=(jax.ShapeDtypeStruct((1, lanes), jnp.float32),
                   jax.ShapeDtypeStruct((1, lanes), jnp.float32)),
        grid=(n_blocks,),
        in_specs=[pl.BlockSpec((block_rows, lanes), lambda i: (i, 0))],
        out_specs=(pl.BlockSpec((1, lanes), lambda i: (0, 0)),
                   pl.BlockSpec((1, lanes), lambda i: (0, 0))),
        compiler_params=pltpu.CompilerParams(
            dimension_semantics=("arbitrary",),
            vmem_limit_bytes=STATS_VMEM_LIMIT),
    )(x_fold)

    # Tiny finalize + scale/shift hoisted out of the conv kernel.
    s = jnp.sum(sums.reshape(fold, c_in), axis=0)
    ss = jnp.sum(ssqs.reshape(fold, c_in), axis=0)
    mean = s / m_total
    # TODO(synk): single-pass E[x^2]-E[x]^2 is cancellation-prone if |mean| >> std;
    # switch to a shifted / two-pass reduction if tolerances tighten.
    var = ss / m_total - mean * mean
    scale = gamma.astype(jnp.float32) * lax.rsqrt(var + EPS)             # (Cin,)
    shift = beta.astype(jnp.float32) - mean * scale                      # (Cin,)

    # ---------------- fused BN + ReLU + banded 3x3 conv ---------------- #
    h_out = (h - 1) // stride + 1          # k=3, pad=1
    w_out = (w - 1) // stride + 1
    c_pad = _pick_c_pad(c_in, w)
    g_out = _pick_g_out(w_out, c_out)
    n_groups = w_out // g_out
    win = stride * (g_out - 1) + 3

    tb = _pick_tb(n, h, w, c_pad, c_out, w_out, g_out, win)
    n_steps = n // tb                       # NOTE: at the demo (N=2) this is 1 step;
    m_rows = _round_up(tb * (h + 1), 8)     # at real batch sizes it keeps >=4 steps/TC.

    w_band = _band_weight(w_hwio, c_pad, g_out, c_out, stride)

    scale_p = jnp.pad(scale, (0, c_pad - c_in))      # padded channels: scale=shift=0
    shift_p = jnp.pad(shift, (0, c_pad - c_in))
    scale_t = jnp.tile(scale_p, w).reshape(1, w * c_pad)
    shift_t = jnp.tile(shift_p, w).reshape(1, w * c_pad)

    x_p = x if c_pad == c_in else jnp.pad(
        x, ((0, 0), (0, 0), (0, 0), (0, c_pad - c_in)))
    x_packed = x_p.reshape(n * h, w * c_pad)         # lane-dense packed activations

    kern = functools.partial(
        _bn_relu_conv_kernel, tb=tb, h=h, w=w, c_pad=c_pad, c_out=c_out,
        g_out=g_out, n_groups=n_groups, win=win, stride=stride, m_rows=m_rows)

    out_flat = pl.pallas_call(
        kern,
        out_shape=jax.ShapeDtypeStruct((n_steps * m_rows, w_out * c_out), out_dtype),
        grid=(n_steps,),
        in_specs=[
            pl.BlockSpec((tb * h, w * c_pad), lambda b: (b, 0)),
            pl.BlockSpec((1, w * c_pad), lambda b: (0, 0)),
            pl.BlockSpec((1, w * c_pad), lambda b: (0, 0)),
            pl.BlockSpec((3, win * c_pad, g_out * c_out), lambda b: (0, 0, 0)),
        ],
        out_specs=pl.BlockSpec((m_rows, w_out * c_out), lambda b: (b, 0)),
        scratch_shapes=[
            pltpu.VMEM((m_rows + 2, (w + 2) * c_pad), jnp.float32),   # stacked padded y
            pltpu.VMEM((m_rows, g_out * c_out), jnp.float32),         # f32 accumulator
        ],
        compiler_params=pltpu.CompilerParams(
            dimension_semantics=("parallel",),
            vmem_limit_bytes=CONV_VMEM_LIMIT),
    )(x_packed, scale_t, shift_t, w_band)

    # TODO(synk): stride>1 is handled by computing all H rows and subsampling here
    # (factor-`stride` H overcompute); a strided stacked band would avoid it.
    out = out_flat.reshape(n_steps, m_rows, w_out, c_out)[:, :tb * (h + 1)]
    out = out.reshape(n_steps, tb, h + 1, w_out, c_out)[:, :, 0:h:stride]
    out = out.reshape(n, h_out, w_out, c_out).astype(jnp.float32)
    return jnp.transpose(out, (0, 3, 1, 2))                              # NCHW


def _reference(x_nchw, gamma, beta, w_oihw, stride=1):
    """Plain-JAX reference mirroring the PyTorch forward (training-mode BN)."""
    x = x_nchw.astype(jnp.float32)
    mean = jnp.mean(x, axis=(0, 2, 3), keepdims=True)
    var = jnp.var(x, axis=(0, 2, 3), keepdims=True)
    y = (x - mean) / jnp.sqrt(var + EPS)
    y = y * gamma.reshape(1, -1, 1, 1) + beta.reshape(1, -1, 1, 1)
    y = jnp.maximum(y, 0.0)
    return lax.conv_general_dilated(
        y, w_oihw.astype(jnp.float32),
        window_strides=(stride, stride), padding=((1, 1), (1, 1)),
        dimension_numbers=("NCHW", "OIHW", "NCHW"))


if __name__ == "__main__":
    N, C_IN, HH, WW = 2, 4, 16, 16
    C_OUT = 8
    STRIDE = 1

    key = jax.random.PRNGKey(0)
    kx, kw_, kg, kb = jax.random.split(key, 4)
    x = jax.random.normal(kx, (N, C_IN, HH, WW), dtype=jnp.float32)           # NCHW
    wgt = 0.1 * jax.random.normal(kw_, (C_OUT, C_IN, 3, 3), dtype=jnp.float32)  # OIHW
    gamma = 1.0 + 0.1 * jax.random.normal(kg, (C_IN,), dtype=jnp.float32)
    beta = 0.1 * jax.random.normal(kb, (C_IN,), dtype=jnp.float32)

    out = bn_relu_conv(x, gamma, beta, wgt, stride=STRIDE)
    out = jax.block_until_ready(out)

    ref = _reference(x, gamma, beta, wgt, stride=STRIDE)
    assert out.shape == ref.shape == (N, C_OUT, HH, WW), (out.shape, ref.shape)
    max_err = float(jnp.max(jnp.abs(out - ref)))
    assert jnp.allclose(out, ref, atol=1e-2, rtol=1e-2), max_err

    print("KERNEL_OK")
</pallas_src>

<mosaic_0001>
module attributes {stable_mosaic.version = 11 : i64} {
  func.func @_bn_stats_kernel(%arg0: i32, %arg1: memref<16x128xf32, #tpu.memory_space<vmem>>, %arg2: memref<1x128xf32, #tpu.memory_space<vmem>>, %arg3: memref<1x128xf32, #tpu.memory_space<vmem>>) attributes {dimension_semantics = [#tpu.dimension_semantics<arbitrary>], iteration_bounds = array<i64: 1>, scalar_prefetch = 0 : i64, scratch_operands = 0 : i64, tpu.core_type = #tpu.core_type<tc>, window_params = [{transform_indices = @transform_0, window_bounds = array<i64: 16, 128>}, {pipeline_mode = #tpu.pipeline_mode<synchronous>, transform_indices = @transform_1, window_bounds = array<i64: 1, 128>}, {pipeline_mode = #tpu.pipeline_mode<synchronous>, transform_indices = @transform_2, window_bounds = array<i64: 1, 128>}]} {
    %c0_i32 = arith.constant 0 : i32
    %0 = arith.cmpi eq, %arg0, %c0_i32 : i32
    %1 = arith.extui %0 : i1 to i32
    %c0_i32_0 = arith.constant 0 : i32
    %2 = arith.cmpi ne, %1, %c0_i32_0 : i32
    scf.if %2 {
      %cst_11 = arith.constant 0.000000e+00 : f32
      %15 = vector.broadcast %cst_11 : f32 to vector<1x128xf32>
      %c0_12 = arith.constant 0 : index
      %c0_13 = arith.constant 0 : index
      %16 = vector.load %arg2[%c0_12, %c0_13] : memref<1x128xf32, #tpu.memory_space<vmem>>, vector<1x128xf32>
      tpu.vector_store %arg2[%c0_12, %c0_13], %15 {strides = array<i32>} : memref<1x128xf32, #tpu.memory_space<vmem>>, vector<1x128xf32>,
      %cst_14 = arith.constant 0.000000e+00 : f32
      %17 = vector.broadcast %cst_14 : f32 to vector<1x128xf32>
      %c0_15 = arith.constant 0 : index
      %c0_16 = arith.constant 0 : index
      %18 = vector.load %arg3[%c0_15, %c0_16] : memref<1x128xf32, #tpu.memory_space<vmem>>, vector<1x128xf32>
      tpu.vector_store %arg3[%c0_15, %c0_16], %17 {strides = array<i32>} : memref<1x128xf32, #tpu.memory_space<vmem>>, vector<1x128xf32>,
    } else {
    }
    %c0 = arith.constant 0 : index
    %c0_1 = arith.constant 0 : index
    %3 = vector.load %arg1[%c0, %c0_1] : memref<16x128xf32, #tpu.memory_space<vmem>>, vector<16x128xf32>
    %c0_2 = arith.constant 0 : index
    %c0_3 = arith.constant 0 : index
    %4 = vector.load %arg2[%c0_2, %c0_3] : memref<1x128xf32, #tpu.memory_space<vmem>>, vector<1x128xf32>
    %cst = arith.constant dense<0.000000e+00> : vector<128xf32>
    %5 = vector.multi_reduction <add>, %3, %cst [0] : vector<16x128xf32> to vector<128xf32>
    %6 = vector.shape_cast %5 : vector<128xf32> to vector<1x128xf32>
    %7 = arith.addf %4, %6 : vector<1x128xf32>
    %c0_4 = arith.constant 0 : index
    %c0_5 = arith.constant 0 : index
    %8 = vector.load %arg2[%c0_4, %c0_5] : memref<1x128xf32, #tpu.memory_space<vmem>>, vector<1x128xf32>
    tpu.vector_store %arg2[%c0_4, %c0_5], %7 {strides = array<i32>} : memref<1x128xf32, #tpu.memory_space<vmem>>, vector<1x128xf32>,
    %c0_6 = arith.constant 0 : index
    %c0_7 = arith.constant 0 : index
    %9 = vector.load %arg3[%c0_6, %c0_7] : memref<1x128xf32, #tpu.memory_space<vmem>>, vector<1x128xf32>
    %10 = arith.mulf %3, %3 : vector<16x128xf32>
    %cst_8 = arith.constant dense<0.000000e+00> : vector<128xf32>
    %11 = vector.multi_reduction <add>, %10, %cst_8 [0] : vector<16x128xf32> to vector<128xf32>
    %12 = vector.shape_cast %11 : vector<128xf32> to vector<1x128xf32>
    %13 = arith.addf %9, %12 : vector<1x128xf32>
    %c0_9 = arith.constant 0 : index
    %c0_10 = arith.constant 0 : index
    %14 = vector.load %arg3[%c0_9, %c0_10] : memref<1x128xf32, #tpu.memory_space<vmem>>, vector<1x128xf32>
    tpu.vector_store %arg3[%c0_9, %c0_10], %13 {strides = array<i32>} : memref<1x128xf32, #tpu.memory_space<vmem>>, vector<1x128xf32>,
    return
  }
  func.func @transform_0(%arg0: i32) -> (i32, i32) {
    %c0_i32 = arith.constant 0 : i32
    %c0_i32_0 = arith.constant 0 : i32
    return %arg0, %c0_i32 : i32, i32
  }
  func.func @transform_1(%arg0: i32) -> (i32, i32) {
    %c0_i32 = arith.constant 0 : i32
    %c0_i32_0 = arith.constant 0 : i32
    %c0_i32_1 = arith.constant 0 : i32
    return %c0_i32, %c0_i32_0 : i32, i32
  }
  func.func @transform_2(%arg0: i32) -> (i32, i32) {
    %c0_i32 = arith.constant 0 : i32
    %c0_i32_0 = arith.constant 0 : i32
    %c0_i32_1 = arith.constant 0 : i32
    return %c0_i32, %c0_i32_0 : i32, i32
  }
}

</mosaic_0001>

<llo_original>
// kernel: tpu_custom_call.1
$region0: #{tpu_custom_call.1}
  #allocation0 [shape = 'u32[]', space=smem, size = 0x4, offset = 0x4, fixed_abs, tag = 'smem constant byte address 0x4 - core index']
  #allocation1 [shape = 'u32[144,128]{1,0:T(1,128)}', space=vmem, size = 0x12000, scoped, tag = 'internal scratch']
  %s0 = inlined_call_operand.hbm [shape: f32[16,128], index: 0, kind: input, shape index: {}]
  %s1 = inlined_call_operand.hbm [shape: f32[1,128], index: 1, kind: output, shape index: {0}]
  %s2 = inlined_call_operand.hbm [shape: f32[1,128], index: 2, kind: output, shape index: {1}]
  %3 = xla_tuple %s1, %s2
  %s4 = sld [smem:[#allocation0]]
  $region30: #{tpu_custom_call.1} parent=0
    _
  %s6 = ssub.s32 1, %s4
  %s7 = scalar_select 0, %s6, %s4
  $region1: #{tpu_custom_call.1} parent=0
    #allocation2 [shape = 'u8[8192]{0}', space=vmem, size = 0x2000, scoped, tag = 'input window, operand 0, single buffered']
    #allocation3 [shape = 's32[1]{0}', space=sflag, size = 0x4, scoped, tag = 'scoped memory for tpu_custom_call.1']
    #allocation4 [shape = 's32[1]{0}', space=sflag, size = 0x4, scoped, tag = 'scoped memory for tpu_custom_call.1']
    #allocation5 [shape = 'u8[512]{0}', space=vmem, size = 0x400, scoped, tag = 'output window, operand 0, single buffered']
    #allocation6 [shape = 'u8[512]{0}', space=vmem, size = 0x400, scoped, tag = 'output window, operand 1, single buffered']
    #allocation7 [shape = 's32[1]{0}', space=sflag, size = 0x4, scoped, tag = 'scoped memory for tpu_custom_call.1']
    %8 = vsyncpa [#allocation3], 0
    %9 = vsyncpa [#allocation4], 0
    %10 = vsyncpa [#allocation7], 0
    // Predicated region
    $region2: #{tpu_custom_call.1} parent=1 // pred_check
      _
    $region3: #{tpu_custom_call.1} parent=1 // pred_check_branch
      %12 = sbr.rel (0) target = $region5
    $region4: #{tpu_custom_call.1} parent=1 // pred_region
      %s14 = ssub.s32 256, 256
      %15 = vsyncadd [#allocation3], %s14
      %s16 = sshll.u32 [#allocation2], 4
      %s17 = int_to_ptr.vmem [resolvable:$true] %s16
      %22 = dma.hbm_to_vmem [thread:$0]  %s0, 256, %s17, [#allocation3], 128, 128, 8
    $region5: #{tpu_custom_call.1} parent=1 // pred_fallthru
      _
    // Predicated region
    $region6: #{tpu_custom_call.1} parent=1 // pred_check
      _
    $region7: #{tpu_custom_call.1} parent=1 // pred_check_branch
      %24 = sbr.rel (0) target = $region9
    $region8: #{tpu_custom_call.1} parent=1 // pred_region
      %25 = dma.done [#allocation3], 256
    $region9: #{tpu_custom_call.1} parent=1 // pred_fallthru
      _
    %p26 = scmp.eq.s32.totalorder 0, 0
    // Predicated region
    $region10: #{tpu_custom_call.1} parent=1 // pred_check
      %p27 = pneg %p26
    $region11: #{tpu_custom_call.1} parent=1 // pred_check_branch
      %29 = sbr.rel (%p27) target = $region13
    $region12: #{tpu_custom_call.1} parent=1 // pred_region
      %30 = vst [vmem:[#allocation5] sm:$0x1] 0.0
      %31 = vst [vmem:[#allocation6] sm:$0x1] 0.0
    $region13: #{tpu_custom_call.1} parent=1 // pred_fallthru
      _
    %v32 = vld [vmem:[#allocation2] sm:$0xff]
    %v33 = vld [vmem:[#allocation2 + $0x8] sm:$0xff]
    %v34 = vld [vmem:[#allocation5] sm:$0x1]
    %v35 = vadd.f32 %v32, %v33
    %v36 = vrot.slane %v35, 4
    %v37 = vadd.f32 %v35, %v36
    %v38 = vrot.slane %v37, 2
    %v39 = vadd.f32 %v37, %v38
    %v40 = vrot.slane %v39, 1
    %v41 = vadd.f32 %v39, %v40
    %v42 = vadd.f32 %v34, %v41
    %43 = vst [vmem:[#allocation5] sm:$0x1] %v42
    %v44 = vld [vmem:[#allocation6] sm:$0x1]
    %v45 = vmul.f32 %v32, %v32
    %v46 = vmul.f32 %v33, %v33
    %v47 = vadd.f32 %v45, %v46
    %v48 = vrot.slane %v47, 4
    %v49 = vadd.f32 %v47, %v48
    %v50 = vrot.slane %v49, 2
    %v51 = vadd.f32 %v49, %v50
    %v52 = vrot.slane %v51, 1
    %v53 = vadd.f32 %v51, %v52
    %v54 = vadd.f32 %v44, %v53
    %55 = vst [vmem:[#allocation6] sm:$0x1] %v54
    // Predicated region
    $region14: #{tpu_custom_call.1} parent=1 // pred_check
      _
    $region15: #{tpu_custom_call.1} parent=1 // pred_check_branch
      %57 = sbr.rel (0) target = $region17
    $region16: #{tpu_custom_call.1} parent=1 // pred_region
      %s59 = ssub.s32 16, 16
      %60 = vsyncadd [#allocation4], %s59
      %s62 = sshll.u32 [#allocation5], 4
      %s63 = int_to_ptr.vmem [resolvable:$true] %s62
      %65 = dma.vmem_to_hbm [thread:$0]  %s63, 16, %s1, [#allocation4]
    $region17: #{tpu_custom_call.1} parent=1 // pred_fallthru
      _
    // Predicated region
    $region18: #{tpu_custom_call.1} parent=1 // pred_check
      _
    $region19: #{tpu_custom_call.1} parent=1 // pred_check_branch
      %67 = sbr.rel (0) target = $region21
    $region20: #{tpu_custom_call.1} parent=1 // pred_region
      %s69 = ssub.s32 16, 16
      %70 = vsyncadd [#allocation7], %s69
      %s72 = sshll.u32 [#allocation6], 4
      %s73 = int_to_ptr.vmem [resolvable:$true] %s72
      %75 = dma.vmem_to_hbm [thread:$0]  %s73, 16, %s2, [#allocation7]
    $region21: #{tpu_custom_call.1} parent=1 // pred_fallthru
      _
    // Predicated region
    $region22: #{tpu_custom_call.1} parent=1 // pred_check
      _
    $region23: #{tpu_custom_call.1} parent=1 // pred_check_branch
      %77 = sbr.rel (0) target = $region25
    $region24: #{tpu_custom_call.1} parent=1 // pred_region
      %78 = dma.done [#allocation4], 16
    $region25: #{tpu_custom_call.1} parent=1 // pred_fallthru
      _
    // Predicated region
    $region26: #{tpu_custom_call.1} parent=1 // pred_check
      _
    $region27: #{tpu_custom_call.1} parent=1 // pred_check_branch
      %80 = sbr.rel (0) target = $region29
    $region28: #{tpu_custom_call.1} parent=1 // pred_region
      %81 = dma.done [#allocation7], 16
    $region29: #{tpu_custom_call.1} parent=1 // pred_fallthru
      _
    %82 = vsyncpa [#allocation3], 1
    %83 = vsyncpa [#allocation4], 1
    %84 = vsyncpa [#allocation7], 1

</llo_original>
